<compile_context>
chip_gen: v6e
topology: v6e:2x2x1
jax: 0.10.0
libtpu: 0.0.40
codegen_flags: <defaults>
</compile_context>

<pallas_src>
import jax
import jax.numpy as jnp
from jax.experimental import pallas as pl
from jax.experimental.pallas import tpu as pltpu

LANE = 128      # TPU lane width (last-dim alignment target)
SUBLANE = 8     # f32 sublane width (second-last-dim alignment target)


def _round_up(x, m):
    return ((x + m - 1) // m) * m


def generator_kernel(z_ref, c_ref, w1z_ref, w1c_ref, b1_ref, w2_ref, b2_ref, out_ref):
    """One batch tile of: ReLU(z@W1_z + c@W1_c + b1) @ W2 + b2 (all lane-padded)."""
    z = z_ref[...].astype(jnp.float32)           # [TB, noise_dim]
    c = c_ref[...].astype(jnp.float32)           # [TB, cond_dim]
    # Split-W1 trick fuses the torch concat into two MXU matmuls.
    h = jnp.dot(z, w1z_ref[...], preferred_element_type=jnp.float32)
    h = h + jnp.dot(c, w1c_ref[...], preferred_element_type=jnp.float32)
    h = jnp.maximum(h + b1_ref[...], 0.0)        # [TB, hidden_pad]  (bias broadcast once/tile)
    y = jnp.dot(h, w2_ref[...], preferred_element_type=jnp.float32)
    out_ref[...] = y + b2_ref[...]               # [TB, out_pad] lane-dense store


def generator_forward(z, cond_info, params, output_dim, *, tb=256):
    """Matches Generator.forward(z, cond_info). Params are lane-padded, W1 pre-split."""
    w1z, w1c, b1, w2, b2 = params
    batch, noise_dim = z.shape
    cond_dim = cond_info.shape[1]
    hidden_pad = w1z.shape[1]
    out_pad = w2.shape[1]

    # Batch tile: multiple of the f32 sublane width, no bigger than the (padded) batch.
    tb_eff = min(tb, _round_up(batch, SUBLANE))
    batch_pad = _round_up(batch, tb_eff)
    if batch_pad != batch:
        z = jnp.pad(z, ((0, batch_pad - batch), (0, 0)))
        cond_info = jnp.pad(cond_info, ((0, batch_pad - batch), (0, 0)))

    grid = (batch_pad // tb_eff,)

    out = pl.pallas_call(
        generator_kernel,
        out_shape=jax.ShapeDtypeStruct((batch_pad, out_pad), jnp.float32),
        grid=grid,
        in_specs=[
            pl.BlockSpec((tb_eff, noise_dim), lambda i: (i, 0)),      # z tile
            pl.BlockSpec((tb_eff, cond_dim), lambda i: (i, 0)),       # cond tile
            pl.BlockSpec((noise_dim, hidden_pad), lambda i: (0, 0)),  # W1_z (resident)
            pl.BlockSpec((cond_dim, hidden_pad), lambda i: (0, 0)),   # W1_c (resident)
            pl.BlockSpec((1, hidden_pad), lambda i: (0, 0)),          # b1   (resident)
            pl.BlockSpec((hidden_pad, out_pad), lambda i: (0, 0)),    # W2   (resident)
            pl.BlockSpec((1, out_pad), lambda i: (0, 0)),             # b2   (resident)
        ],
        out_specs=pl.BlockSpec((tb_eff, out_pad), lambda i: (i, 0)),
        compiler_params=pltpu.CompilerParams(
            # batch tiles are independent -> shard across v7x's 2 TCs
            dimension_semantics=("parallel",),
        ),
    )(z, cond_info, w1z, w1c, b1, w2, b2)
    # Strip batch padding and the zero-padded output lanes.
    return out[:batch, :output_dim]


def init_generator_params(key, cond_dim, noise_dim, output_dim, hidden=50):
    """torch.nn.Linear-style init (uniform(-1/sqrt(fan_in), 1/sqrt(fan_in))),
    stored transposed ([in, out]), zero-padded to 128 lanes, W1 split into z/c parts."""
    in_dim = cond_dim + noise_dim
    hidden_pad = _round_up(hidden, LANE)
    out_pad = _round_up(output_dim, LANE)
    k1, k2, k3, k4 = jax.random.split(key, 4)
    bound1 = 1.0 / jnp.sqrt(float(in_dim))
    bound2 = 1.0 / jnp.sqrt(float(hidden))

    w1 = jax.random.uniform(k1, (in_dim, hidden), jnp.float32, -bound1, bound1)
    b1 = jax.random.uniform(k2, (hidden,), jnp.float32, -bound1, bound1)
    w2 = jax.random.uniform(k3, (hidden, output_dim), jnp.float32, -bound2, bound2)
    b2 = jax.random.uniform(k4, (output_dim,), jnp.float32, -bound2, bound2)

    # Zero-pad feature dims to the lane width; padded entries are exactly 0 so
    # the math is preserved and the wrapper's final slice removes padded lanes.
    w1p = jnp.zeros((in_dim, hidden_pad), jnp.float32).at[:, :hidden].set(w1)
    b1p = jnp.zeros((1, hidden_pad), jnp.float32).at[0, :hidden].set(b1)
    w2p = jnp.zeros((hidden_pad, out_pad), jnp.float32).at[:hidden, :output_dim].set(w2)
    b2p = jnp.zeros((1, out_pad), jnp.float32).at[0, :output_dim].set(b2)

    # Split W1 by the torch concat order: rows [0:noise_dim] multiply z,
    # rows [noise_dim:] multiply cond_info.
    w1z = w1p[:noise_dim]
    w1c = w1p[noise_dim:]
    return (w1z, w1c, b1p, w2p, b2p)


if __name__ == "__main__":
    # Small shapes consistent with the module's forward signature.
    batch = 8
    cond_dim = 4
    noise_dim = 4
    output_dim = 3

    key = jax.random.PRNGKey(0)
    kz, kc, kp = jax.random.split(key, 3)
    z = jax.random.normal(kz, (batch, noise_dim), jnp.float32)
    cond_info = jax.random.normal(kc, (batch, cond_dim), jnp.float32)
    params = init_generator_params(kp, cond_dim, noise_dim, output_dim)

    out = generator_forward(z, cond_info, params, output_dim)
    out = jax.block_until_ready(out)

    # Pure-JAX reference check (reassemble W1 from the split/padded parts).
    w1z, w1c, b1, w2, b2 = params
    x = jnp.concatenate([z, cond_info], axis=1).astype(jnp.float32)
    w1 = jnp.concatenate([w1z, w1c], axis=0)
    ref = (jnp.maximum(x @ w1 + b1, 0.0) @ w2 + b2)[:, :output_dim]
    assert out.shape == (batch, output_dim)
    assert jnp.allclose(out, ref, atol=1e-5, rtol=1e-5)

    print("KERNEL_OK")
</pallas_src>

<mosaic_0001>
module attributes {stable_mosaic.version = 11 : i64} {
  func.func @generator_kernel(%arg0: i32, %arg1: memref<8x4xf32, #tpu.memory_space<vmem>>, %arg2: memref<8x4xf32, #tpu.memory_space<vmem>>, %arg3: memref<4x128xf32, #tpu.memory_space<vmem>>, %arg4: memref<4x128xf32, #tpu.memory_space<vmem>>, %arg5: memref<1x128xf32, #tpu.memory_space<vmem>>, %arg6: memref<128x128xf32, #tpu.memory_space<vmem>>, %arg7: memref<1x128xf32, #tpu.memory_space<vmem>>, %arg8: memref<8x128xf32, #tpu.memory_space<vmem>>) attributes {dimension_semantics = [#tpu.dimension_semantics<parallel>], iteration_bounds = array<i64: 1>, scalar_prefetch = 0 : i64, scratch_operands = 0 : i64, tpu.core_type = #tpu.core_type<tc>, window_params = [{transform_indices = @transform_0, window_bounds = array<i64: 8, 4>}, {transform_indices = @transform_1, window_bounds = array<i64: 8, 4>}, {pipeline_mode = #tpu.pipeline_mode<synchronous>, transform_indices = @transform_2, window_bounds = array<i64: 4, 128>}, {pipeline_mode = #tpu.pipeline_mode<synchronous>, transform_indices = @transform_3, window_bounds = array<i64: 4, 128>}, {pipeline_mode = #tpu.pipeline_mode<synchronous>, transform_indices = @transform_4, window_bounds = array<i64: 1, 128>}, {pipeline_mode = #tpu.pipeline_mode<synchronous>, transform_indices = @transform_5, window_bounds = array<i64: 128, 128>}, {pipeline_mode = #tpu.pipeline_mode<synchronous>, transform_indices = @transform_6, window_bounds = array<i64: 1, 128>}, {transform_indices = @transform_7, window_bounds = array<i64: 8, 128>}]} {
    %c0 = arith.constant 0 : index
    %c0_0 = arith.constant 0 : index
    %0 = vector.load %arg1[%c0, %c0_0] : memref<8x4xf32, #tpu.memory_space<vmem>>, vector<8x4xf32>
    %c0_1 = arith.constant 0 : index
    %c0_2 = arith.constant 0 : index
    %1 = vector.load %arg2[%c0_1, %c0_2] : memref<8x4xf32, #tpu.memory_space<vmem>>, vector<8x4xf32>
    %c0_3 = arith.constant 0 : index
    %c0_4 = arith.constant 0 : index
    %2 = vector.load %arg3[%c0_3, %c0_4] : memref<4x128xf32, #tpu.memory_space<vmem>>, vector<4x128xf32>
    %cst = arith.constant dense<0.000000e+00> : vector<8x128xf32>
    %3 = tpu.matmul %0, %2, %cst {dimension_numbers = #tpu.dot_dimension_numbers<[1], [0], [0], [1], [0, 0, 1, 1], [], []>} : vector<8x4xf32>, vector<4x128xf32>, vector<8x128xf32> -> vector<8x128xf32>
    %c0_5 = arith.constant 0 : index
    %c0_6 = arith.constant 0 : index
    %4 = vector.load %arg4[%c0_5, %c0_6] : memref<4x128xf32, #tpu.memory_space<vmem>>, vector<4x128xf32>
    %cst_7 = arith.constant dense<0.000000e+00> : vector<8x128xf32>
    %5 = tpu.matmul %1, %4, %cst_7 {dimension_numbers = #tpu.dot_dimension_numbers<[1], [0], [0], [1], [0, 0, 1, 1], [], []>} : vector<8x4xf32>, vector<4x128xf32>, vector<8x128xf32> -> vector<8x128xf32>
    %6 = arith.addf %3, %5 : vector<8x128xf32>
    %c0_8 = arith.constant 0 : index
    %c0_9 = arith.constant 0 : index
    %7 = vector.load %arg5[%c0_8, %c0_9] : memref<1x128xf32, #tpu.memory_space<vmem>>, vector<1x128xf32>
    %8 = vector.broadcast %7 : vector<1x128xf32> to vector<8x128xf32>
    %9 = arith.addf %6, %8 : vector<8x128xf32>
    %cst_10 = arith.constant 0.000000e+00 : f32
    %10 = vector.broadcast %cst_10 : f32 to vector<8x128xf32>
    %11 = arith.maximumf %9, %10 : vector<8x128xf32>
    %c0_11 = arith.constant 0 : index
    %c0_12 = arith.constant 0 : index
    %12 = vector.load %arg6[%c0_11, %c0_12] : memref<128x128xf32, #tpu.memory_space<vmem>>, vector<128x128xf32>
    %cst_13 = arith.constant dense<0.000000e+00> : vector<8x128xf32>
    %13 = tpu.matmul %11, %12, %cst_13 {dimension_numbers = #tpu.dot_dimension_numbers<[1], [0], [0], [1], [0, 0, 1, 1], [], []>} : vector<8x128xf32>, vector<128x128xf32>, vector<8x128xf32> -> vector<8x128xf32>
    %c0_14 = arith.constant 0 : index
    %c0_15 = arith.constant 0 : index
    %14 = vector.load %arg7[%c0_14, %c0_15] : memref<1x128xf32, #tpu.memory_space<vmem>>, vector<1x128xf32>
    %15 = vector.broadcast %14 : vector<1x128xf32> to vector<8x128xf32>
    %16 = arith.addf %13, %15 : vector<8x128xf32>
    %c0_16 = arith.constant 0 : index
    %c0_17 = arith.constant 0 : index
    %17 = vector.load %arg8[%c0_16, %c0_17] : memref<8x128xf32, #tpu.memory_space<vmem>>, vector<8x128xf32>
    tpu.vector_store %arg8[%c0_16, %c0_17], %16 {strides = array<i32>} : memref<8x128xf32, #tpu.memory_space<vmem>>, vector<8x128xf32>,
    return
  }
  func.func @transform_0(%arg0: i32) -> (i32, i32) {
    %c0_i32 = arith.constant 0 : i32
    %c0_i32_0 = arith.constant 0 : i32
    return %arg0, %c0_i32 : i32, i32
  }
  func.func @transform_1(%arg0: i32) -> (i32, i32) {
    %c0_i32 = arith.constant 0 : i32
    %c0_i32_0 = arith.constant 0 : i32
    return %arg0, %c0_i32 : i32, i32
  }
  func.func @transform_2(%arg0: i32) -> (i32, i32) {
    %c0_i32 = arith.constant 0 : i32
    %c0_i32_0 = arith.constant 0 : i32
    %c0_i32_1 = arith.constant 0 : i32
    return %c0_i32, %c0_i32_0 : i32, i32
  }
  func.func @transform_3(%arg0: i32) -> (i32, i32) {
    %c0_i32 = arith.constant 0 : i32
    %c0_i32_0 = arith.constant 0 : i32
    %c0_i32_1 = arith.constant 0 : i32
    return %c0_i32, %c0_i32_0 : i32, i32
  }
  func.func @transform_4(%arg0: i32) -> (i32, i32) {
    %c0_i32 = arith.constant 0 : i32
    %c0_i32_0 = arith.constant 0 : i32
    %c0_i32_1 = arith.constant 0 : i32
    return %c0_i32, %c0_i32_0 : i32, i32
  }
  func.func @transform_5(%arg0: i32) -> (i32, i32) {
    %c0_i32 = arith.constant 0 : i32
    %c0_i32_0 = arith.constant 0 : i32
    %c0_i32_1 = arith.constant 0 : i32
    return %c0_i32, %c0_i32_0 : i32, i32
  }
  func.func @transform_6(%arg0: i32) -> (i32, i32) {
    %c0_i32 = arith.constant 0 : i32
    %c0_i32_0 = arith.constant 0 : i32
    %c0_i32_1 = arith.constant 0 : i32
    return %c0_i32, %c0_i32_0 : i32, i32
  }
  func.func @transform_7(%arg0: i32) -> (i32, i32) {
    %c0_i32 = arith.constant 0 : i32
    %c0_i32_0 = arith.constant 0 : i32
    return %arg0, %c0_i32 : i32, i32
  }
}

</mosaic_0001>

<llo_original>
// kernel: tpu_custom_call.1
$region0: #{tpu_custom_call.1}
  #allocation0 [shape = 'u32[]', space=smem, size = 0x4, offset = 0x4, fixed_abs, tag = 'smem constant byte address 0x4 - core index']
  #allocation1 [shape = 'u32[144,128]{1,0:T(1,128)}', space=vmem, size = 0x12000, scoped, tag = 'internal scratch']
  %s0 = inlined_call_operand.vmem [shape: f32[8,4], index: 0, kind: input, shape index: {}]
  %s1 = inlined_call_operand.vmem [shape: f32[8,4], index: 1, kind: input, shape index: {}]
  %s2 = inlined_call_operand.vmem [shape: f32[4,128], index: 2, kind: input, shape index: {}]
  %s3 = inlined_call_operand.vmem [shape: f32[4,128], index: 3, kind: input, shape index: {}]
  %s4 = inlined_call_operand.vmem [shape: f32[1,128], index: 4, kind: input, shape index: {}]
  %s5 = inlined_call_operand.hbm [shape: f32[128,128], index: 5, kind: input, shape index: {}]
  %s6 = inlined_call_operand.vmem [shape: f32[1,128], index: 6, kind: input, shape index: {}]
  %s7 = inlined_call_operand.hbm [shape: f32[8,128], index: 7, kind: output, shape index: {}]
  %s8 = sld [smem:[#allocation0]]
  $region42: #{tpu_custom_call.1} parent=0
    _
  %s10 = ssub.s32 1, %s8
  %s11 = scalar_select 0, %s10, %s8
  $region1: #{tpu_custom_call.1} parent=0
    #allocation2 [shape = 'u8[65536]{0}', space=vmem, size = 0x10000, scoped, tag = 'input window, operand 5, single buffered']
    #allocation3 [shape = 's32[1]{0}', space=sflag, size = 0x4, scoped, tag = 'scoped memory for tpu_custom_call.1']
    #allocation4 [shape = 's32[1]{0}', space=sflag, size = 0x4, scoped, tag = 'scoped memory for tpu_custom_call.1']
    #allocation5 [shape = 'u8[4096]{0}', space=vmem, size = 0x1000, scoped, tag = 'output window, operand 0, single buffered']
    %12 = vsyncpa [#allocation3], 0
    %13 = vsyncpa [#allocation4], 0
    // Predicated region
    $region2: #{tpu_custom_call.1} parent=1 // pred_check
      _
    $region3: #{tpu_custom_call.1} parent=1 // pred_check_branch
      %15 = sbr.rel (0) target = $region5
    $region4: #{tpu_custom_call.1} parent=1 // pred_region
      _
    $region5: #{tpu_custom_call.1} parent=1 // pred_fallthru
      _
    // Predicated region
    $region6: #{tpu_custom_call.1} parent=1 // pred_check
      _
    $region7: #{tpu_custom_call.1} parent=1 // pred_check_branch
      %17 = sbr.rel (0) target = $region9
    $region8: #{tpu_custom_call.1} parent=1 // pred_region
      _
    $region9: #{tpu_custom_call.1} parent=1 // pred_fallthru
      _
    // Predicated region
    $region10: #{tpu_custom_call.1} parent=1 // pred_check
      _
    $region11: #{tpu_custom_call.1} parent=1 // pred_check_branch
      %19 = sbr.rel (0) target = $region13
    $region12: #{tpu_custom_call.1} parent=1 // pred_region
      _
    $region13: #{tpu_custom_call.1} parent=1 // pred_fallthru
      _
    // Predicated region
    $region14: #{tpu_custom_call.1} parent=1 // pred_check
      _
    $region15: #{tpu_custom_call.1} parent=1 // pred_check_branch
      %21 = sbr.rel (0) target = $region17
    $region16: #{tpu_custom_call.1} parent=1 // pred_region
      _
    $region17: #{tpu_custom_call.1} parent=1 // pred_fallthru
      _
    // Predicated region
    $region18: #{tpu_custom_call.1} parent=1 // pred_check
      _
    $region19: #{tpu_custom_call.1} parent=1 // pred_check_branch
      %23 = sbr.rel (0) target = $region21
    $region20: #{tpu_custom_call.1} parent=1 // pred_region
      _
    $region21: #{tpu_custom_call.1} parent=1 // pred_fallthru
      _
    // Predicated region
    $region22: #{tpu_custom_call.1} parent=1 // pred_check
      _
    $region23: #{tpu_custom_call.1} parent=1 // pred_check_branch
      %25 = sbr.rel (0) target = $region25
    $region24: #{tpu_custom_call.1} parent=1 // pred_region
      %s27 = ssub.s32 2048, 2048
      %28 = vsyncadd [#allocation3], %s27
      %s29 = sshll.u32 [#allocation2], 4
      %s30 = int_to_ptr.vmem [resolvable:$true] %s29
      %35 = dma.hbm_to_vmem [thread:$0]  %s5, 2048, %s30, [#allocation3], 128, 128, 8
    $region25: #{tpu_custom_call.1} parent=1 // pred_fallthru
      _
    // Predicated region
    $region26: #{tpu_custom_call.1} parent=1 // pred_check
      _
    $region27: #{tpu_custom_call.1} parent=1 // pred_check_branch
      %37 = sbr.rel (0) target = $region29
    $region28: #{tpu_custom_call.1} parent=1 // pred_region
      _
    $region29: #{tpu_custom_call.1} parent=1 // pred_fallthru
      _
    // Predicated region
    $region30: #{tpu_custom_call.1} parent=1 // pred_check
      _
    $region31: #{tpu_custom_call.1} parent=1 // pred_check_branch
      %39 = sbr.rel (0) target = $region33
    $region32: #{tpu_custom_call.1} parent=1 // pred_region
      %40 = dma.done [#allocation3], 2048
    $region33: #{tpu_custom_call.1} parent=1 // pred_fallthru
      _
    %v41 = vld [vmem:[%s0] sm:$0xff]
    %v42 = vld [vmem:[%s1] sm:$0xff]
    %v43 = vld [vmem:[%s2] sm:$0xf]
    %v44 = vld [vmem:[%s3] sm:$0xf]
    %vm45 = vcmask 31744
    %v47 = vsel %vm45, %v42, 0
    %vm49 = vcmask 1043456
    %v51 = vsel %vm49, %v44, 0
    %53 = vmatprep.subr.mxu0 0.0
    %54 = vmatpush1.msra.mxu0 0.0
    %55 = vmatprep.subr.mxu0 0.0
    %56 = vmatpush1.msra.mxu0 0.0
    %57 = vmatprep.subr.mxu0 0.0
    %58 = vmatpush1.msra.mxu0 0.0
    %59 = vmatprep.subr.mxu0 0.0
    %60 = vmatpush1.msra.mxu0 0.0
    %61 = vmatprep.subr.mxu0 0.0
    %62 = vmatpush1.msra.mxu0 0.0
    %63 = vmatprep.subr.mxu0 0.0
    %64 = vmatpush1.msra.mxu0 0.0
    %65 = vmatprep.subr.mxu0 0.0
    %66 = vmatpush1.msra.mxu0 0.0
    %67 = vmatprep.subr.mxu0 0.0
    %68 = vmatpush1.msra.mxu0 0.0
    %69 = vmatprep.subr.mxu0 0.0
    %70 = vmatpush1.msra.mxu0 0.0
    %71 = vmatprep.subr.mxu0 0.0
    %72 = vmatpush1.msra.mxu0 0.0
    %73 = vmatprep.subr.mxu0 0.0
    %74 = vmatpush1.msra.mxu0 0.0
    %75 = vmatprep.subr.mxu0 0.0
    %76 = vmatpush1.msra.mxu0 0.0
    %77 = vmatprep.subr.mxu0 0.0
    %78 = vmatpush1.msra.mxu0 0.0
    %79 = vmatprep.subr.mxu0 0.0
    %80 = vmatpush1.msra.mxu0 0.0
    %81 = vmatprep.subr.mxu0 0.0
    %82 = vmatpush1.msra.mxu0 0.0
    %83 = vmatprep.subr.mxu0 0.0
    %84 = vmatpush1.msra.mxu0 %v51
    %85 = vmatprep.subr.mxu0 0.0
    %86 = vmatpush2.msra.mxu0 0.0
    %87 = vmatprep.subr.mxu0 0.0
    %88 = vmatpush2.msra.mxu0 0.0
    %89 = vmatprep.subr.mxu0 0.0
    %90 = vmatpush2.msra.mxu0 0.0
    %91 = vmatprep.subr.mxu0 0.0
    %92 = vmatpush2.msra.mxu0 0.0
    %93 = vmatprep.subr.mxu0 0.0
    %94 = vmatpush2.msra.mxu0 0.0
    %95 = vmatprep.subr.mxu0 0.0
    %96 = vmatpush2.msra.mxu0 0.0
    %97 = vmatprep.subr.mxu0 0.0
    %98 = vmatpush2.msra.mxu0 0.0
    %99 = vmatprep.subr.mxu0 0.0
    %100 = vmatpush2.msra.mxu0 0.0
    %101 = vmatprep.subr.mxu0 0.0
    %102 = vmatpush2.msra.mxu0 0.0
    %103 = vmatprep.subr.mxu0 0.0
    %104 = vmatpush2.msra.mxu0 0.0
    %105 = vmatprep.subr.mxu0 0.0
    %106 = vmatpush2.msra.mxu0 0.0
    %107 = vmatprep.subr.mxu0 0.0
    %108 = vmatpush2.msra.mxu0 0.0
    %109 = vmatprep.subr.mxu0 0.0
    %110 = vmatpush2.msra.mxu0 0.0
    %111 = vmatprep.subr.mxu0 0.0
    %112 = vmatpush2.msra.mxu0 0.0
    %113 = vmatprep.subr.mxu0 0.0
    %114 = vmatpush2.msra.mxu0 0.0
    %115 = vmatprep.subr.mxu0 0.0
    %116 = vmatpush2.msra.mxu0 0.0
    %117 = vmatprep.mubr.f32.mxu0 0.0
    %118 = vmatmul.mubr.f32.gmra.mxu0 %v47
    %v119 = vpop.f32.mrf.mxu0
    %v120 = vadd.f32 0.0, %v119
    %v121 = vpop.f32.mrf.mxu0
    %122 = vdwg.mxu0
    %v124 = vsel %vm45, %v41, 0
    %v127 = vsel %vm49, %v43, 0
    %129 = vmatprep.subr.mxu0 0.0
    %130 = vmatpush1.msra.mxu0 0.0
    %131 = vmatprep.subr.mxu0 0.0
    %132 = vmatpush1.msra.mxu0 0.0
    %133 = vmatprep.subr.mxu0 0.0
    %134 = vmatpush1.msra.mxu0 0.0
    %135 = vmatprep.subr.mxu0 0.0
    %136 = vmatpush1.msra.mxu0 0.0
    %137 = vmatprep.subr.mxu0 0.0
    %138 = vmatpush1.msra.mxu0 0.0
    %139 = vmatprep.subr.mxu0 0.0
    %140 = vmatpush1.msra.mxu0 0.0
    %141 = vmatprep.subr.mxu0 0.0
    %142 = vmatpush1.msra.mxu0 0.0
    %143 = vmatprep.subr.mxu0 0.0
    %144 = vmatpush1.msra.mxu0 0.0
    %145 = vmatprep.subr.mxu0 0.0
    %146 = vmatpush1.msra.mxu0 0.0
    %147 = vmatprep.subr.mxu0 0.0
    %148 = vmatpush1.msra.mxu0 0.0
    %149 = vmatprep.subr.mxu0 0.0
    %150 = vmatpush1.msra.mxu0 0.0
    %151 = vmatprep.subr.mxu0 0.0
    %152 = vmatpush1.msra.mxu0 0.0
    %153 = vmatprep.subr.mxu0 0.0
    %154 = vmatpush1.msra.mxu0 0.0
    %155 = vmatprep.subr.mxu0 0.0
    %156 = vmatpush1.msra.mxu0 0.0
    %157 = vmatprep.subr.mxu0 0.0
    %158 = vmatpush1.msra.mxu0 0.0
    %159 = vmatprep.subr.mxu0 0.0
    %160 = vmatpush1.msra.mxu0 %v127
    %161 = vmatprep.subr.mxu0 0.0
    %162 = vmatpush2.msra.mxu0 0.0
    %163 = vmatprep.subr.mxu0 0.0
    %164 = vmatpush2.msra.mxu0 0.0
    %165 = vmatprep.subr.mxu0 0.0
    %166 = vmatpush2.msra.mxu0 0.0
    %167 = vmatprep.subr.mxu0 0.0
    %168 = vmatpush2.msra.mxu0 0.0
    %169 = vmatprep.subr.mxu0 0.0
    %170 = vmatpush2.msra.mxu0 0.0
    %171 = vmatprep.subr.mxu0 0.0
    %172 = vmatpush2.msra.mxu0 0.0
    %173 = vmatprep.subr.mxu0 0.0
    %174 = vmatpush2.msra.mxu0 0.0
    %175 = vmatprep.subr.mxu0 0.0
    %176 = vmatpush2.msra.mxu0 0.0
    %177 = vmatprep.subr.mxu0 0.0
    %178 = vmatpush2.msra.mxu0 0.0
    %179 = vmatprep.subr.mxu0 0.0
    %180 = vmatpush2.msra.mxu0 0.0
    %181 = vmatprep.subr.mxu0 0.0
    %182 = vmatpush2.msra.mxu0 0.0
    %183 = vmatprep.subr.mxu0 0.0
    %184 = vmatpush2.msra.mxu0 0.0
    %185 = vmatprep.subr.mxu0 0.0
    %186 = vmatpush2.msra.mxu0 0.0
    %187 = vmatprep.subr.mxu0 0.0
    %188 = vmatpush2.msra.mxu0 0.0
    %189 = vmatprep.subr.mxu0 0.0
    %190 = vmatpush2.msra.mxu0 0.0
    %191 = vmatprep.subr.mxu0 0.0
    %192 = vmatpush2.msra.mxu0 0.0
    %193 = vmatprep.mubr.f32.mxu0 0.0
    %194 = vmatmul.mubr.f32.gmra.mxu0 %v124
    %v195 = vpop.f32.mrf.mxu0
    %v196 = vadd.f32 %v120, %v195
    %v197 = vpop.f32.mrf.mxu0
    %198 = vdwg.mxu0
    %v199 = vld [vmem:[%s4] sm:$0x1]
    %v201 = vlaneseq
    %v202 = vshrl.u32 %v201, 7
    %v203 = vsub.s32 0, %v202
    %v204 = vrot.slane %v199, %v203
    %v206 = vadd.f32 %v196, %v204
    %v207 = vmax.f32 %v206, 0.0
    %v208 = vld [vmem:[#allocation2] sm:$0xff]
    %v209 = vld [vmem:[#allocation2 + $0x8] sm:$0xff]
    %v210 = vld [vmem:[#allocation2 + $0x10] sm:$0xff]
    %v211 = vld [vmem:[#allocation2 + $0x18] sm:$0xff]
    %v212 = vld [vmem:[#allocation2 + $0x20] sm:$0xff]
    %v213 = vld [vmem:[#allocation2 + $0x28] sm:$0xff]
    %v214 = vld [vmem:[#allocation2 + $0x30] sm:$0xff]
    %v215 = vld [vmem:[#allocation2 + $0x38] sm:$0xff]
    %v216 = vld [vmem:[#allocation2 + $0x40] sm:$0xff]
    %v217 = vld [vmem:[#allocation2 + $0x48] sm:$0xff]
    %v218 = vld [vmem:[#allocation2 + $0x50] sm:$0xff]
    %v219 = vld [vmem:[#allocation2 + $0x58] sm:$0xff]
    %v220 = vld [vmem:[#allocation2 + $0x60] sm:$0xff]
    %v221 = vld [vmem:[#allocation2 + $0x68] sm:$0xff]
    %v222 = vld [vmem:[#allocation2 + $0x70] sm:$0xff]
    %v223 = vld [vmem:[#allocation2 + $0x78] sm:$0xff]
    %v224 = vld [vmem:[%s6] sm:$0x1]
    %v226 = vlaneseq
    %v227 = vshrl.u32 %v226, 7
    %v228 = vsub.s32 0, %v227
    %v229 = vrot.slane %v224, %v228
    %231 = vmatprep.subr.mxu0 0.0
    %232 = vmatpush1.msra.mxu0 %v223
    %233 = vmatprep.subr.mxu0 0.0
    %234 = vmatpush1.msra.mxu0 %v222
    %235 = vmatprep.subr.mxu0 0.0
    %236 = vmatpush1.msra.mxu0 %v221
    %237 = vmatprep.subr.mxu0 0.0
    %238 = vmatpush1.msra.mxu0 %v220
    %239 = vmatprep.subr.mxu0 0.0
    %240 = vmatpush1.msra.mxu0 %v219
    %241 = vmatprep.subr.mxu0 0.0
    %242 = vmatpush1.msra.mxu0 %v218
    %243 = vmatprep.subr.mxu0 0.0
    %244 = vmatpush1.msra.mxu0 %v217
    %245 = vmatprep.subr.mxu0 0.0
    %246 = vmatpush1.msra.mxu0 %v216
    %247 = vmatprep.subr.mxu0 0.0
    %248 = vmatpush1.msra.mxu0 %v215
    %249 = vmatprep.subr.mxu0 0.0
    %250 = vmatpush1.msra.mxu0 %v214
    %251 = vmatprep.subr.mxu0 0.0
    %252 = vmatpush1.msra.mxu0 %v213
    %253 = vmatprep.subr.mxu0 0.0
    %254 = vmatpush1.msra.mxu0 %v212
    %255 = vmatprep.subr.mxu0 0.0
    %256 = vmatpush1.msra.mxu0 %v211
    %257 = vmatprep.subr.mxu0 0.0
    %258 = vmatpush1.msra.mxu0 %v210
    %259 = vmatprep.subr.mxu0 0.0
    %260 = vmatpush1.msra.mxu0 %v209
    %261 = vmatprep.subr.mxu0 0.0
    %262 = vmatpush1.msra.mxu0 %v208
    %263 = vmatprep.subr.mxu0 0.0
    %264 = vmatpush2.msra.mxu0 0.0
    %265 = vmatprep.subr.mxu0 0.0
    %266 = vmatpush2.msra.mxu0 0.0
    %267 = vmatprep.subr.mxu0 0.0
    %268 = vmatpush2.msra.mxu0 0.0
    %269 = vmatprep.subr.mxu0 0.0
    %270 = vmatpush2.msra.mxu0 0.0
    %271 = vmatprep.subr.mxu0 0.0
    %272 = vmatpush2.msra.mxu0 0.0
    %273 = vmatprep.subr.mxu0 0.0
    %274 = vmatpush2.msra.mxu0 0.0
    %275 = vmatprep.subr.mxu0 0.0
    %276 = vmatpush2.msra.mxu0 0.0
    %277 = vmatprep.subr.mxu0 0.0
    %278 = vmatpush2.msra.mxu0 0.0
    %279 = vmatprep.subr.mxu0 0.0
    %280 = vmatpush2.msra.mxu0 0.0
    %281 = vmatprep.subr.mxu0 0.0
    %282 = vmatpush2.msra.mxu0 0.0
    %283 = vmatprep.subr.mxu0 0.0
    %284 = vmatpush2.msra.mxu0 0.0
    %285 = vmatprep.subr.mxu0 0.0
    %286 = vmatpush2.msra.mxu0 0.0
    %287 = vmatprep.subr.mxu0 0.0
    %288 = vmatpush2.msra.mxu0 0.0
    %289 = vmatprep.subr.mxu0 0.0
    %290 = vmatpush2.msra.mxu0 0.0
    %291 = vmatprep.subr.mxu0 0.0
    %292 = vmatpush2.msra.mxu0 0.0
    %293 = vmatprep.subr.mxu0 0.0
    %294 = vmatpush2.msra.mxu0 0.0
    %295 = vmatprep.mubr.f32.mxu0 0.0
    %296 = vmatmul.mubr.f32.gmra.mxu0 %v207
    %v297 = vpop.f32.mrf.mxu0
    %v298 = vadd.f32 %v229, %v297
    %v299 = vpop.f32.mrf.mxu0
    %300 = vdwg.mxu0
    %301 = vst [vmem:[#allocation5] sm:$0xff] %v298
    // Predicated region
    $region34: #{tpu_custom_call.1} parent=1 // pred_check
      _
    $region35: #{tpu_custom_call.1} parent=1 // pred_check_branch
      %303 = sbr.rel (0) target = $region37
    $region36: #{tpu_custom_call.1} parent=1 // pred_region
      %s305 = ssub.s32 128, 128
      %306 = vsyncadd [#allocation4], %s305
      %s308 = sshll.u32 [#allocation5], 4
      %s309 = int_to_ptr.vmem [resolvable:$true] %s308
      %311 = dma.vmem_to_hbm [thread:$0]  %s309, 128, %s7, [#allocation4]
    $region37: #{tpu_custom_call.1} parent=1 // pred_fallthru
      _
    // Predicated region
    $region38: #{tpu_custom_call.1} parent=1 // pred_check
      _
    $region39: #{tpu_custom_call.1} parent=1 // pred_check_branch
      %313 = sbr.rel (0) target = $region41
    $region40: #{tpu_custom_call.1} parent=1 // pred_region
      %314 = dma.done [#allocation4], 128
    $region41: #{tpu_custom_call.1} parent=1 // pred_fallthru
      _
    %315 = vsyncpa [#allocation3], 1
    %316 = vsyncpa [#allocation4], 1

</llo_original>
